<compile_context>
chip_gen: v7x
topology: tpu7x:2x2x1
jax: 0.10.0
libtpu: 0.0.40
codegen_flags: <defaults>
</compile_context>

<pallas_src>
import functools

import jax
import jax.numpy as jnp
import numpy as np
from jax.experimental import pallas as pl
from jax.experimental.pallas import tpu as pltpu

_SMOOTH = 1e-5


# --------------------------------------------------------------------------
# Kernel: per-(batch, spatial-tile) partial sums for all classes at once.
# --------------------------------------------------------------------------
def _dice_partial_kernel(x_ref, lab_ref, out_ref, *, n_classes, hw, tile,
                         softmax, need_mask):
    # x_ref  : (1, C, tile) scores/logits
    # lab_ref: (1, 1, tile) int32 class indices (padded positions hold C)
    # out_ref: (1, C, 3) resident accumulator: [:, :, 0]=intersect,
    #          [:, :, 1]=y_sum, [:, :, 2]=z_sum
    j = pl.program_id(1)

    @pl.when(j == 0)
    def _():
        out_ref[...] = jnp.zeros_like(out_ref)

    s = x_ref[0].astype(jnp.float32)                      # (C, T)

    if softmax:
        # Fused softmax over the class (sublane) axis, fully local to the tile.
        m = jnp.max(s, axis=0, keepdims=True)
        e = jnp.exp(s - m)
        s = e / jnp.sum(e, axis=0, keepdims=True)

    if need_mask:
        # Zero out padded spatial positions (only needed on the softmax path,
        # where padded zero-logit columns would otherwise contribute 1/C).
        lane = jax.lax.broadcasted_iota(jnp.int32, (1, tile), 1) + j * tile
        s = jnp.where(lane < hw, s, 0.0)

    labels = lab_ref[0]                                   # (1, T) int32
    cls = jax.lax.broadcasted_iota(jnp.int32, (n_classes, tile), 0)
    mask = labels == cls                                  # (C, T) one-hot bool

    inter = jnp.sum(jnp.where(mask, s, 0.0), axis=1, keepdims=True)   # (C, 1)
    y_sum = jnp.sum(mask.astype(jnp.float32), axis=1, keepdims=True)  # (C, 1)
    z_sum = jnp.sum(s * s, axis=1, keepdims=True)                     # (C, 1)

    out_ref[...] += jnp.concatenate([inter, y_sum, z_sum], axis=1)[None]


# --------------------------------------------------------------------------
# Spatial tile choice: 128-multiple, byte-budgeted so double-buffered blocks
# stay far below v5e's 16 MiB default scoped VMEM.
# --------------------------------------------------------------------------
def _choose_tile(hw, n_classes, target_bytes=2 << 20):
    max_elems = max(128, ((target_bytes // 4) // max(n_classes, 1)) // 128 * 128)
    if hw <= max_elems:
        return hw                      # full extent: always a legal block dim
    # Prefer an exact 128-multiple divisor of HW (no padding needed).
    for t in range(max_elems, 127, -128):
        if hw % t == 0:
            return t
    return max_elems                   # fall back to padding + masking


# --------------------------------------------------------------------------
# Wrapper matching DiceLoss.forward(inputs, target, weight=None, softmax=False)
# --------------------------------------------------------------------------
def dice_loss(inputs, target, weight=None, softmax=False):
    """inputs: (B, C, H, W) float, target: (B, H, W) int class ids -> scalar."""
    B, C = int(inputs.shape[0]), int(inputs.shape[1])
    HW = int(np.prod(inputs.shape[2:]))

    # Native layout — contiguous reshape only, no transpose.
    x = inputs.astype(jnp.float32).reshape(B, C, HW)
    labels = target.astype(jnp.int32).reshape(B, 1, HW)

    tile = _choose_tile(HW, C)
    n_tiles = pl.cdiv(HW, tile)
    hw_pad = n_tiles * tile
    pad = hw_pad - HW
    if pad:
        x = jnp.pad(x, ((0, 0), (0, 0), (0, pad)))
        # Pad labels with an out-of-range class id so they match no class.
        labels = jnp.pad(labels, ((0, 0), (0, 0), (0, pad)), constant_values=C)

    kernel = functools.partial(
        _dice_partial_kernel,
        n_classes=C, hw=HW, tile=tile,
        softmax=bool(softmax), need_mask=bool(pad) and bool(softmax))

    partials = pl.pallas_call(
        kernel,
        out_shape=jax.ShapeDtypeStruct((B, C, 3), jnp.float32),
        grid_spec=pltpu.PrefetchScalarGridSpec(
            num_scalar_prefetch=0,
            grid=(B, n_tiles),
            in_specs=[
                pl.BlockSpec((1, C, tile), lambda b, j: (b, 0, j)),
                pl.BlockSpec((1, 1, tile), lambda b, j: (b, 0, j)),
            ],
            out_specs=pl.BlockSpec((1, C, 3), lambda b, j: (b, 0, 0)),
        ),
        compiler_params=pltpu.CompilerParams(
            dimension_semantics=("parallel", "arbitrary")),
    )(x, labels)

    # Tiny finalize on (C,)-sized arrays in plain JAX.
    sums = jnp.sum(partials, axis=0)                 # (C, 3)
    inter, y_sum, z_sum = sums[:, 0], sums[:, 1], sums[:, 2]
    dice = 1.0 - (2.0 * inter + _SMOOTH) / (z_sum + y_sum + _SMOOTH)

    if weight is None:
        w = jnp.ones((C,), jnp.float32)
    else:
        w = jnp.asarray(weight, jnp.float32)
    # TODO(synk): the PyTorch module also builds `class_wise_dice` via .item()
    # host readbacks (diagnostic only); the returned loss does not use it.
    return jnp.sum(dice * w) / C


# --------------------------------------------------------------------------
# Pure-JAX reference mirroring the PyTorch module (for verification).
# --------------------------------------------------------------------------
def dice_loss_ref(inputs, target, weight=None, softmax=False):
    n_classes = inputs.shape[1]
    x = jax.nn.softmax(inputs, axis=1) if softmax else inputs
    if weight is None:
        weight = [1.0] * n_classes
    smooth = 1e-5
    loss = 0.0
    for i in range(n_classes):
        s = x[:, i].astype(jnp.float32)
        t = (target == i).astype(jnp.float32)
        inter = jnp.sum(s * t)
        y = jnp.sum(t * t)
        z = jnp.sum(s * s)
        dice = 1.0 - (2.0 * inter + smooth) / (z + y + smooth)
        loss = loss + dice * float(weight[i])
    return loss / n_classes


if __name__ == "__main__":
    key = jax.random.PRNGKey(0)
    k1, k2 = jax.random.split(key)
    B, C, H, W = 2, 4, 16, 16
    logits = jax.random.normal(k1, (B, C, H, W), jnp.float32)
    labels = jax.random.randint(k2, (B, H, W), 0, C, jnp.int32)

    # (1) Default forward (softmax=False): caller supplies probabilities.
    probs = jax.nn.softmax(logits, axis=1)
    out1 = jax.block_until_ready(dice_loss(probs, labels))
    ref1 = dice_loss_ref(probs, labels)
    np.testing.assert_allclose(np.asarray(out1), np.asarray(ref1),
                               rtol=1e-5, atol=1e-6)

    # (2) softmax=True path (softmax fused into the dice kernel).
    out2 = jax.block_until_ready(dice_loss(logits, labels, softmax=True))
    ref2 = dice_loss_ref(logits, labels, softmax=True)
    np.testing.assert_allclose(np.asarray(out2), np.asarray(ref2),
                               rtol=1e-5, atol=1e-6)

    # (3) Per-class weights.
    wts = [0.5, 1.0, 1.5, 2.0]
    out3 = jax.block_until_ready(dice_loss(probs, labels, weight=wts))
    ref3 = dice_loss_ref(probs, labels, weight=wts)
    np.testing.assert_allclose(np.asarray(out3), np.asarray(ref3),
                               rtol=1e-5, atol=1e-6)

    print("KERNEL_OK")
</pallas_src>

<mosaic_0001>
module attributes {stable_mosaic.version = 11 : i64} {
  func.func @_dice_partial_kernel(%arg0: i32, %arg1: i32, %arg2: memref<1x4x256xf32, #tpu.memory_space<vmem>>, %arg3: memref<1x1x256xi32, #tpu.memory_space<vmem>>, %arg4: memref<1x4x3xf32, #tpu.memory_space<vmem>>) attributes {dimension_semantics = [#tpu.dimension_semantics<parallel>, #tpu.dimension_semantics<arbitrary>], iteration_bounds = array<i64: 2, 1>, scalar_prefetch = 0 : i64, scratch_operands = 0 : i64, tpu.core_type = #tpu.core_type<tc>, window_params = [{transform_indices = @transform_0, window_bounds = array<i64: 1, 4, 256>}, {transform_indices = @transform_1, window_bounds = array<i64: 1, 1, 256>}, {transform_indices = @transform_2, window_bounds = array<i64: 1, 4, 3>}]} {
    %c0_i32 = arith.constant 0 : i32
    %0 = arith.cmpi eq, %arg1, %c0_i32 : i32
    %1 = arith.extui %0 : i1 to i32
    %c0_i32_0 = arith.constant 0 : i32
    %2 = arith.cmpi ne, %1, %c0_i32_0 : i32
    scf.if %2 {
      %cst_15 = arith.constant 0.000000e+00 : f32
      %26 = vector.broadcast %cst_15 : f32 to vector<1x4x3xf32>
      %c0_16 = arith.constant 0 : index
      %c0_17 = arith.constant 0 : index
      %c0_18 = arith.constant 0 : index
      %27 = vector.load %arg4[%c0_16, %c0_17, %c0_18] : memref<1x4x3xf32, #tpu.memory_space<vmem>>, vector<1x4x3xf32>
      tpu.vector_store %arg4[%c0_16, %c0_17, %c0_18], %26 {strides = array<i32>} : memref<1x4x3xf32, #tpu.memory_space<vmem>>, vector<1x4x3xf32>,
    } else {
    }
    %c0 = arith.constant 0 : index
    %c0_1 = arith.constant 0 : index
    %c0_2 = arith.constant 0 : index
    %3 = vector.load %arg2[%c0, %c0_1, %c0_2] : memref<1x4x256xf32, #tpu.memory_space<vmem>>, vector<1x4x256xf32>
    %4 = vector.shape_cast %3 : vector<1x4x256xf32> to vector<4x256xf32>
    %c0_3 = arith.constant 0 : index
    %c0_4 = arith.constant 0 : index
    %c0_5 = arith.constant 0 : index
    %5 = vector.load %arg3[%c0_3, %c0_4, %c0_5] : memref<1x1x256xi32, #tpu.memory_space<vmem>>, vector<1x1x256xi32>
    %6 = vector.shape_cast %5 : vector<1x1x256xi32> to vector<1x256xi32>
    %7 = tpu.iota {dimensions = array<i32: 0>} : vector<4x256xi32>
    %8 = vector.broadcast %6 : vector<1x256xi32> to vector<4x256xi32>
    %9 = arith.cmpi eq, %8, %7 : vector<4x256xi32>
    %cst = arith.constant 0.000000e+00 : f32
    %10 = vector.broadcast %cst : f32 to vector<4x256xf32>
    %11 = arith.select %9, %4, %10 : vector<4x256xi1>, vector<4x256xf32>
    %cst_6 = arith.constant dense<0.000000e+00> : vector<4xf32>
    %12 = vector.multi_reduction <add>, %11, %cst_6 [1] : vector<4x256xf32> to vector<4xf32>
    %13 = vector.shape_cast %12 : vector<4xf32> to vector<4x1xf32>
    %14 = arith.extui %9 : vector<4x256xi1> to vector<4x256xi32>
    %15 = arith.sitofp %14 : vector<4x256xi32> to vector<4x256xf32>
    %cst_7 = arith.constant dense<0.000000e+00> : vector<4xf32>
    %16 = vector.multi_reduction <add>, %15, %cst_7 [1] : vector<4x256xf32> to vector<4xf32>
    %17 = vector.shape_cast %16 : vector<4xf32> to vector<4x1xf32>
    %18 = arith.mulf %4, %4 : vector<4x256xf32>
    %cst_8 = arith.constant dense<0.000000e+00> : vector<4xf32>
    %19 = vector.multi_reduction <add>, %18, %cst_8 [1] : vector<4x256xf32> to vector<4xf32>
    %20 = vector.shape_cast %19 : vector<4xf32> to vector<4x1xf32>
    %c0_9 = arith.constant 0 : index
    %c0_10 = arith.constant 0 : index
    %c0_11 = arith.constant 0 : index
    %21 = vector.load %arg4[%c0_9, %c0_10, %c0_11] : memref<1x4x3xf32, #tpu.memory_space<vmem>>, vector<1x4x3xf32>
    %22 = tpu.concatenate %13, %17, %20 in 1 : vector<4x1xf32>, vector<4x1xf32>, vector<4x1xf32> -> vector<4x3xf32>
    %23 = vector.shape_cast %22 : vector<4x3xf32> to vector<1x4x3xf32>
    %24 = arith.addf %21, %23 : vector<1x4x3xf32>
    %c0_12 = arith.constant 0 : index
    %c0_13 = arith.constant 0 : index
    %c0_14 = arith.constant 0 : index
    %25 = vector.load %arg4[%c0_12, %c0_13, %c0_14] : memref<1x4x3xf32, #tpu.memory_space<vmem>>, vector<1x4x3xf32>
    tpu.vector_store %arg4[%c0_12, %c0_13, %c0_14], %24 {strides = array<i32>} : memref<1x4x3xf32, #tpu.memory_space<vmem>>, vector<1x4x3xf32>,
    return
  }
  func.func @transform_0(%arg0: i32, %arg1: i32) -> (i32, i32, i32) {
    %c0_i32 = arith.constant 0 : i32
    %c0_i32_0 = arith.constant 0 : i32
    return %arg0, %c0_i32, %arg1 : i32, i32, i32
  }
  func.func @transform_1(%arg0: i32, %arg1: i32) -> (i32, i32, i32) {
    %c0_i32 = arith.constant 0 : i32
    %c0_i32_0 = arith.constant 0 : i32
    return %arg0, %c0_i32, %arg1 : i32, i32, i32
  }
  func.func @transform_2(%arg0: i32, %arg1: i32) -> (i32, i32, i32) {
    %c0_i32 = arith.constant 0 : i32
    %c0_i32_0 = arith.constant 0 : i32
    %c0_i32_1 = arith.constant 0 : i32
    return %arg0, %c0_i32, %c0_i32_0 : i32, i32, i32
  }
}

</mosaic_0001>

<llo_original>
// kernel: tpu_custom_call.1
$region0: #{tpu_custom_call.1}
  #allocation0 [shape = 'u32[]', space=smem, size = 0x4, offset = 0x4, fixed_abs, tag = 'smem constant byte address 0x4 - core index']
  #allocation1 [shape = 'u32[144,128]{1,0:T(1,128)}', space=vmem, size = 0x12000, scoped, tag = 'internal scratch']
  %s0 = inlined_call_operand.hbm [shape: f32[2,4,256], index: 0, kind: input, shape index: {}]
  %s1 = inlined_call_operand.hbm [shape: s32[2,1,256], index: 1, kind: input, shape index: {}]
  %s2 = inlined_call_operand.vmem [shape: f32[2,4,3], index: 2, kind: output, shape index: {}]
  %s3 = sld [smem:[#allocation0]]
  $region53: #{tpu_custom_call.1} parent=0
    _
  %s5 = ssub.s32 1, %s3
  %s6 = scalar_select 0, %s5, %s3
  $region1: #{tpu_custom_call.1} parent=0
    #allocation2 [shape = 'u8[8192]{0}', space=vmem, size = 0x2000, scoped, tag = 'input window, operand 0']
    #allocation3 [shape = 's32[2]{0}', space=sflag, size = 0x8, scoped, tag = 'scoped memory for tpu_custom_call.1']
    #allocation4 [shape = 'u8[2048]{0}', space=vmem, size = 0x800, scoped, tag = 'input window, operand 1']
    #allocation5 [shape = 's32[2]{0}', space=sflag, size = 0x8, scoped, tag = 'scoped memory for tpu_custom_call.1']
    %7 = vsyncpa [#allocation3], 0
    %s8 = scalar_lea.sflag [#allocation3], 1
    %9 = vsyncpa %s8, 0
    %10 = vsyncpa [#allocation5], 0
    %s11 = scalar_lea.sflag [#allocation5], 1
    %12 = vsyncpa %s11, 0
    loop: start=0, step=1, limit=4
    $region2: #{tpu_custom_call.1} parent=1 // loop_pre_header
      _
    $region3: #{tpu_custom_call.1} parent=1 // loop_header
      %s14 = sphi 0, %s18
      %p15 = scmp.ge.s32.totalorder %s14, 4
      %s21 = sphi 0, %s33
      %s22 = sphi 0, %s29
      %s23 = sphi 0, %s21
      %s24 = sphi 0, %s22
      %s25 = sphi 0, %s23
      %s26 = sphi 0, %s24
      %s38 = sphi 0, %s40
      %s41 = sphi 0, %s38
      %s42 = sphi 0, %s41
      %s58 = sphi 0, %s42
      %s66 = sphi 0, %s68
      %s69 = sphi 0, %s66
      %s70 = sphi 0, %s69
      %s86 = sphi 0, %s70
      %s92 = sphi 0, %s94
      %s95 = sphi 0, %s92
      %s96 = sphi 0, %s95
      %s112 = sphi 0, %s96
    $region4: #{tpu_custom_call.1} parent=1 // loop_header_branch
      %17 = sbr.rel (%p15) target = $region8
    $region5: #{tpu_custom_call.1} parent=1 // loop_body
      %s19 = ssub.s32 %s14, 1
      %s20 = ssub.s32 %s14, 2
      %s27 = sadd.s32 1, %s22
      %p28 = scmp.ge.s32.totalorder %s27, 1
      %s29 = scalar_select %p28, 0, %s27
      %s30 = sadd.s32 1, %s21
      %s31 = scalar_select %p28, %s30, %s21
      %p32 = scmp.ge.s32.totalorder %s31, 2
      %s33 = scalar_select %p32, 0, %s31
      %s34 = ssub.s32 %s21, %s33
      %s35 = ssub.s32 %s22, %s29
      %s36 = sor.u32 %s34, %s35
      %p37 = scmp.eq.s32.totalorder %s36, 0
      %s39 = sadd.s32 %s38, 1
      %s40 = scalar_select %p37, %s38, %s39
      %p43 = pneg %p37
      %p44 = scmp.eq.s32.totalorder %s14, 1
      %p45 = por %p43, %p44
      %p46 = scmp.ne.s32.totalorder %s38, %s41
      %p47 = scmp.eq.s32.totalorder %s14, 0
      %p48 = por %p46, %p47
      %p49 = scmp.ne.s32.totalorder %s38, %s41
      %p50 = scmp.eq.s32.totalorder %s19, 1
      %p51 = por %p49, %p50
      %p52 = scmp.ne.s32.totalorder %s41, %s42
      %p53 = scmp.eq.s32.totalorder %s19, 0
      %p54 = por %p52, %p53
      %p55 = scmp.ne.s32.totalorder %s41, %s42
      %p56 = scmp.eq.s32.totalorder %s20, 1
      %p57 = por %p55, %p56
      %p59 = scmp.ne.s32.totalorder %s42, %s58
      %p60 = scmp.eq.s32.totalorder %s20, 0
      %p61 = por %p59, %p60
      %s62 = ssub.s32 %s21, %s33
      %s63 = ssub.s32 %s22, %s29
      %s64 = sor.u32 %s62, %s63
      %p65 = scmp.eq.s32.totalorder %s64, 0
      %s67 = sadd.s32 %s66, 1
      %s68 = scalar_select %p65, %s66, %s67
      %p71 = pneg %p65
      %p72 = scmp.eq.s32.totalorder %s14, 1
      %p73 = por %p71, %p72
      %p74 = scmp.ne.s32.totalorder %s66, %s69
      %p75 = scmp.eq.s32.totalorder %s14, 0
      %p76 = por %p74, %p75
      %p77 = scmp.ne.s32.totalorder %s66, %s69
      %p78 = scmp.eq.s32.totalorder %s19, 1
      %p79 = por %p77, %p78
      %p80 = scmp.ne.s32.totalorder %s69, %s70
      %p81 = scmp.eq.s32.totalorder %s19, 0
      %p82 = por %p80, %p81
      %p83 = scmp.ne.s32.totalorder %s69, %s70
      %p84 = scmp.eq.s32.totalorder %s20, 1
      %p85 = por %p83, %p84
      %p87 = scmp.ne.s32.totalorder %s70, %s86
      %p88 = scmp.eq.s32.totalorder %s20, 0
      %p89 = por %p87, %p88
      %s90 = ssub.s32 %s21, %s33
      %p91 = scmp.eq.s32.totalorder %s90, 0
      %s93 = sadd.s32 %s92, 1
      %s94 = scalar_select %p91, %s92, %s93
      %p97 = pneg %p91
      %p98 = scmp.eq.s32.totalorder %s14, 1
      %p99 = por %p97, %p98
      %p100 = scmp.ne.s32.totalorder %s92, %s95
      %p101 = scmp.eq.s32.totalorder %s14, 0
      %p102 = por %p100, %p101
      %p103 = scmp.ne.s32.totalorder %s92, %s95
      %p104 = scmp.eq.s32.totalorder %s19, 1
      %p105 = por %p103, %p104
      %p106 = scmp.ne.s32.totalorder %s95, %s96
      %p107 = scmp.eq.s32.totalorder %s19, 0
      %p108 = por %p106, %p107
      %p109 = scmp.ne.s32.totalorder %s95, %s96
      %p110 = scmp.eq.s32.totalorder %s20, 1
      %p111 = por %p109, %p110
      %p113 = scmp.ne.s32.totalorder %s96, %s112
      %p114 = scmp.eq.s32.totalorder %s20, 0
      %p115 = por %p113, %p114
      %p116 = scmp.le.s32.totalorder 1, %s14
      %p117 = scmp.lt.s32.totalorder %s14, 3
      %p118 = pnand %p116, %p117
      %p119 = pneg %p118
      // Predicated region
      $region9: #{tpu_custom_call.1} parent=5 // pred_check
        _
      $region10: #{tpu_custom_call.1} parent=5 // pred_check_branch
        %121 = sbr.rel (%p118) target = $region12
      $region11: #{tpu_custom_call.1} parent=5 // pred_region
        %s122 = ssub.s32 %s14, 1
      $region12: #{tpu_custom_call.1} parent=5 // pred_fallthru
        _
      %p123 = scmp.lt.s32.totalorder %s14, 2
      // Predicated region
      $region13: #{tpu_custom_call.1} parent=5 // pred_check
        %p124 = pneg %p123
      $region14: #{tpu_custom_call.1} parent=5 // pred_check_branch
        %126 = sbr.rel (%p124) target = $region16
      $region15: #{tpu_custom_call.1} parent=5 // pred_region
        // Predicated region
        $region17: #{tpu_custom_call.1} parent=15 // pred_check
          %p127 = pneg %p48
        $region18: #{tpu_custom_call.1} parent=15 // pred_check_branch
          %129 = sbr.rel (%p127) target = $region20
        $region19: #{tpu_custom_call.1} parent=15 // pred_region
          %s130 = sand.u32 %s38, 1
          %s131 = scalar_lea.sflag [#allocation3], %s130
          %s132 = sand.u32 %s38, 1
          %s133 = smul.addr %s132, 8
          %s134 = scalar_lea.vmem [#allocation2], %s133
          %s135 = smul.u32 2, %s22
          %s137 = ssub.s32 128, 128
          %138 = vsyncadd %s131, %s137
          %s139 = smul.addr %s21, 2
          %s140 = sadd.s32 %s135, %s139
          %s141 = smul.addr %s140, 64
          %s142 = scalar_lea.hbm %s0, %s141
          %s144 = sshll.u32 %s134, 4
          %s145 = int_to_ptr.vmem [resolvable:$true] %s144
          %147 = dma.hbm_to_vmem [thread:$0]  %s142, 128, %s145, %s131
        $region20: #{tpu_custom_call.1} parent=15 // pred_fallthru
          _
        // Predicated region
        $region21: #{tpu_custom_call.1} parent=15 // pred_check
          %p148 = pneg %p76
        $region22: #{tpu_custom_call.1} parent=15 // pred_check_branch
          %150 = sbr.rel (%p148) target = $region24
        $region23: #{tpu_custom_call.1} parent=15 // pred_region
          %s151 = sand.u32 %s66, 1
          %s152 = scalar_lea.sflag [#allocation5], %s151
          %s153 = sand.u32 %s66, 1
          %s154 = smul.addr %s153, 2
          %s155 = scalar_lea.vmem [#allocation4], %s154
          %s156 = smul.u32 2, %s22
          %s158 = ssub.s32 32, 32
          %159 = vsyncadd %s152, %s158
          %s160 = smul.addr %s21, 2
          %s161 = sadd.s32 %s156, %s160
          %s162 = smul.addr %s161, 16
          %s163 = scalar_lea.hbm %s1, %s162
          %s165 = sshll.u32 %s155, 4
          %s166 = int_to_ptr.vmem [resolvable:$true] %s165
          %168 = dma.hbm_to_vmem [thread:$0]  %s163, 32, %s166, %s152
        $region24: #{tpu_custom_call.1} parent=15 // pred_fallthru
          _
      $region16: #{tpu_custom_call.1} parent=5 // pred_fallthru
        _
      %p169 = scmp.le.s32.totalorder 1, %s14
      %p170 = scmp.lt.s32.totalorder %s14, 3
      %p171 = pnand %p169, %p170
      %p172 = pneg %p171
      // Predicated region
      $region25: #{tpu_custom_call.1} parent=5 // pred_check
        _
      $region26: #{tpu_custom_call.1} parent=5 // pred_check_branch
        %174 = sbr.rel (%p171) target = $region28
      $region27: #{tpu_custom_call.1} parent=5 // pred_region
        %s175 = ssub.s32 %s14, 1
        %s176 = sand.u32 %s41, 1
        %s177 = scalar_lea.sflag [#allocation3], %s176
        %s178 = sand.u32 %s41, 1
        %s179 = smul.addr %s178, 8
        %s180 = scalar_lea.vmem [#allocation2], %s179
        // Predicated region
        $region29: #{tpu_custom_call.1} parent=27 // pred_check
          %p181 = pneg %p54
        $region30: #{tpu_custom_call.1} parent=27 // pred_check_branch
          %183 = sbr.rel (%p181) target = $region32
        $region31: #{tpu_custom_call.1} parent=27 // pred_region
          %184 = dma.done %s177, 128
        $region32: #{tpu_custom_call.1} parent=27 // pred_fallthru
          _
        %s185 = sand.u32 %s69, 1
        %s186 = scalar_lea.sflag [#allocation5], %s185
        %s187 = sand.u32 %s69, 1
        %s188 = smul.addr %s187, 2
        %s189 = scalar_lea.vmem [#allocation4], %s188
        // Predicated region
        $region33: #{tpu_custom_call.1} parent=27 // pred_check
          %p190 = pneg %p82
        $region34: #{tpu_custom_call.1} parent=27 // pred_check_branch
          %192 = sbr.rel (%p190) target = $region36
        $region35: #{tpu_custom_call.1} parent=27 // pred_region
          %193 = dma.done %s186, 32
        $region36: #{tpu_custom_call.1} parent=27 // pred_fallthru
          _
        %s194 = sand.u32 %s41, 1
        %s195 = scalar_lea.sflag [#allocation3], %s194
        %s196 = sand.u32 %s41, 1
        %s197 = smul.addr %s196, 8
        %s198 = scalar_lea.vmem [#allocation2], %s197
        %p199 = pneg %p54
        %p200 = pneg %p51
        %s201 = sand.u32 %s69, 1
        %s202 = scalar_lea.sflag [#allocation5], %s201
        %s203 = sand.u32 %s69, 1
        %s204 = smul.addr %s203, 2
        %s205 = scalar_lea.vmem [#allocation4], %s204
        %p206 = pneg %p82
        %p207 = pneg %p79
        %p208 = pneg %p108
        %p209 = pneg %p105
        %p210 = scmp.lt.s32.totalorder %s23, 1
        %s211 = scalar_select %p210, %s23, 1
        %s212 = smul.addr %s211, 4
        %s213 = scalar_lea.vmem %s2, %s212
        %s214 = smul.u32 2, %s24
        %s215 = smul.u32 2, %s24
        %p216 = scmp.lt.s32.totalorder %s23, 1
        %s217 = scalar_select %p216, %s23, 1
        %s218 = smul.addr %s217, 4
        %s219 = scalar_lea.vmem %s2, %s218
        %p220 = scmp.eq.s32.totalorder %s24, 0
        // Predicated region
        $region37: #{tpu_custom_call.1} parent=27 // pred_check
          %p221 = pneg %p220
        $region38: #{tpu_custom_call.1} parent=27 // pred_check_branch
          %223 = sbr.rel (%p221) target = $region40
        $region39: #{tpu_custom_call.1} parent=27 // pred_region
          %vm224 = vcmask 19456
          %225 = vst.msk [vmem:[%s219] sm:$0xf] %vm224, 0.0
        $region40: #{tpu_custom_call.1} parent=27 // pred_fallthru
          _
        %v226 = vld [vmem:[%s180] sm:$0xff]
        %v227 = vld [vmem:[%s189] sm:$0x3]
        %v228 = vlaneseq
        %v229 = vshrl.u32 %v228, 7
        %v230 = vlaneseq
        %v231 = vshrl.u32 %v230, 7
        %v232 = vsub.s32 0, %v231
        %v233 = vrot.slane %v227, %v232
        %v234 = vlaneseq
        %v235 = vshrl.u32 %v234, 7
        %v236 = vsub.s32 1, %v235
        %v237 = vrot.slane %v227, %v236
        %vm238 = vcmp.eq.s32.totalorder %v233, %v229
        %vm239 = vcmp.eq.s32.totalorder %v237, %v229
        %v241 = vcombine.high %v226, %v226
        %v243 = vsel %vm238, %v226, 0.0
        %v244 = vsel %vm239, %v241, 0.0
        %vm245 = vcmask 1043456
        %v246 = vsel %vm245, %v243, 0.0
        %v247 = vsel %vm245, %v244, 0.0
        %v248 = vadd.f32 %v246, %v247
        %249 = vadd.xlane.f32.xlu0 %v248
        %v250 = vpop.xlane.xlu0 %249
        %v251 = vsel %vm238, 1, 0
        %v252 = vsel %vm239, 1, 0
        %v253 = vcvt.s32.f32 %v251
        %v254 = vcvt.s32.f32 %v252
        %v255 = vsel %vm245, %v253, 0.0
        %v256 = vsel %vm245, %v254, 0.0
        %v257 = vadd.f32 %v255, %v256
        %258 = vadd.xlane.f32.xlu0 %v257
        %v259 = vpop.xlane.xlu0 %258
        %v260 = vmul.f32 %v226, %v226
        %v262 = vcombine.high %v260, %v260
        %v264 = vsel %vm245, %v260, 0.0
        %v265 = vsel %vm245, %v262, 0.0
        %v266 = vadd.f32 %v264, %v265
        %267 = vadd.xlane.f32.xlu0 %v266
        %v268 = vpop.xlane.xlu0 %267
        %v269 = vld [vmem:[%s219] sm:$0xf]
        %vm270 = vcmask 7168
        %v271 = vsel %vm270, %v250, %v259
        %vm272 = vcmask 15360
        %v273 = vsel %vm272, %v271, %v268
        %v274 = vadd.f32 %v269, %v273
        %vm275 = vcmask 19456
        %276 = vst.msk [vmem:[%s219] sm:$0xf] %vm275, %v274
        %p277 = scmp.lt.s32.totalorder %s23, 1
        %s278 = scalar_select %p277, %s23, 1
        %s279 = smul.addr %s278, 4
        %s280 = scalar_lea.vmem %s2, %s279
        // Predicated region
        $region41: #{tpu_custom_call.1} parent=27 // pred_check
          %p281 = pneg %p105
        $region42: #{tpu_custom_call.1} parent=27 // pred_check_branch
          %283 = sbr.rel (%p281) target = $region44
        $region43: #{tpu_custom_call.1} parent=27 // pred_region
          _
        $region44: #{tpu_custom_call.1} parent=27 // pred_fallthru
          _
      $region28: #{tpu_custom_call.1} parent=5 // pred_fallthru
        _
      %p284 = scmp.le.s32.totalorder 2, %s14
      // Predicated region
      $region45: #{tpu_custom_call.1} parent=5 // pred_check
        %p285 = pneg %p284
      $region46: #{tpu_custom_call.1} parent=5 // pred_check_branch
        %287 = sbr.rel (%p285) target = $region48
      $region47: #{tpu_custom_call.1} parent=5 // pred_region
        %s288 = ssub.s32 %s14, 2
        // Predicated region
        $region49: #{tpu_custom_call.1} parent=47 // pred_check
          %p289 = pneg %p111
        $region50: #{tpu_custom_call.1} parent=47 // pred_check_branch
          %291 = sbr.rel (%p289) target = $region52
        $region51: #{tpu_custom_call.1} parent=47 // pred_region
          %p292 = scmp.lt.s32.totalorder %s25, 1
          %s293 = scalar_select %p292, %s25, 1
          %s294 = smul.addr %s293, 4
          %s295 = scalar_lea.vmem %s2, %s294
        $region52: #{tpu_custom_call.1} parent=47 // pred_fallthru
          _
      $region48: #{tpu_custom_call.1} parent=5 // pred_fallthru
        _
    $region6: #{tpu_custom_call.1} parent=1 // loop_footer
      %s18 = sadd.s32 1, %s14
    $region7: #{tpu_custom_call.1} parent=1 // loop_footer_branch
      %13 = sbr.rel target = $region3
    $region8: #{tpu_custom_call.1} parent=1 // loop_exit
      _
    %296 = vsyncpa [#allocation3], 1
    %s297 = scalar_lea.sflag [#allocation3], 1
    %298 = vsyncpa %s297, 1
    %299 = vsyncpa [#allocation5], 1
    %s300 = scalar_lea.sflag [#allocation5], 1
    %301 = vsyncpa %s300, 1

</llo_original>
